<compile_context>
chip_gen: v7x
topology: tpu7x:2x2x1
jax: 0.10.0
libtpu: 0.0.40
codegen_flags: <defaults>
</compile_context>

<pallas_src>
import itertools

import jax
import jax.numpy as jnp
from jax.experimental import pallas as pl
from jax.experimental.pallas import tpu as pltpu


def _round_up(x, m):
    return ((x + m - 1) // m) * m


def _cdiv(a, b):
    return -(-a // b)


def _choose_tiling(BN, tile_n):
    """Pick (tile, BN_pad): tile multiple of 128, even grid length on v7x."""
    tile_n = _round_up(tile_n, 128)
    nt = _cdiv(BN, tile_n)
    # v7x has 2 TensorCores sharing the 1-D parallel grid: prefer an even
    # number of steps (and >= 2) whenever there is enough work to split.
    if nt % 2 == 1 and BN > 128:
        nt += 1
    tile = _round_up(_cdiv(BN, nt), 128)
    nt = _cdiv(BN, tile)
    if nt % 2 == 1 and nt > 1:
        nt += 1  # rare re-rounding case; pads at most one extra tile
    return tile, nt * tile


def _our_conv3d_kernel(wg_ref, k_ref, b_ref, o_ref):
    """out_tile = wg @ K_folded + bias.

    wg_ref : (tile_n, 27*C_in) bf16  weight-scaled gathered neighbor features
    k_ref  : (27*C_in, C_out)  bf16  folded conv kernel (VMEM-resident)
    b_ref  : (1, C_out)        f32   bias (VMEM-resident)
    o_ref  : (tile_n, C_out)   f32   output rows (row-major, no transpose later)
    """
    acc = jnp.dot(wg_ref[...], k_ref[...],
                  preferred_element_type=jnp.float32)      # (tile_n, C_out) f32
    # Bias added once per particle (quadratic B-spline weights sum to 1, so
    # this equals the reference's per-offset weight * bias accumulation).
    o_ref[...] = acc + b_ref[...]


def our_conv3d(inp, pos, kernel, bias, grid_min, dx, *, tile_n=8192):
    """Pallas implementation of OurConv3d.forward.

    inp   : (B, C_in, X, Y, Z) float32  (NCDHW, like PyTorch)
    pos   : (B, N, 3)          float32
    kernel: (3, 3, 3, C_in, C_out)
    bias  : (C_out,)
    grid_min, dx: (3,) float32 buffers
    returns (B, N, C_out) float32
    """
    B, C_in, X, Y, Z = inp.shape
    _, N, _ = pos.shape
    C_out = kernel.shape[-1]
    BN = B * N
    K27 = 27 * C_in

    grid_vals = jnp.transpose(inp, (0, 2, 3, 4, 1))          # (B, X, Y, Z, C_in)

    Xp = (pos - grid_min) / dx                               # (B, N, 3)
    base = Xp.astype(jnp.int32)                              # trunc == torch .int()
    fx = Xp - base.astype(Xp.dtype) - 0.5
    w = jnp.stack([0.5 * (0.5 - fx) ** 2,
                   0.75 - fx ** 2,
                   0.5 * (0.5 + fx) ** 2], axis=-2)          # (B, N, 3, 3)

    b_idx = jnp.arange(B)[:, None]                           # (B, 1)

    # TODO(synk): the data-dependent 3D gather stays in XLA; note jnp indexing
    # clamps out-of-range indices (the torch module would error), so positions
    # must stay strictly inside the grid for exact parity.
    wg_list, k_list = [], []
    for (i, j, k) in itertools.product(range(3), repeat=3):
        weight = (w[..., i, 0] * w[..., j, 1] * w[..., k, 2])[..., None]  # (B,N,1)
        ix = base[..., 0] + (i - 1)
        iy = base[..., 1] + (j - 1)
        iz = base[..., 2] + (k - 1)
        gathered = grid_vals[b_idx, ix, iy, iz]              # (B, N, C_in) f32
        # Pre-scale by the trilinear weight in f32, cast once to bf16; the
        # multiply fuses into the convert XLA already performs for the slab.
        wg_list.append((weight * gathered).astype(jnp.bfloat16))
        k_list.append(kernel[i, j, k])                       # (C_in, C_out)

    # Offset-major fold: column index = offset*C_in + channel.
    wg27 = jnp.stack(wg_list, axis=2).reshape(BN, K27)       # (BN, 27*C_in) bf16
    k_flat = jnp.stack(k_list, axis=0).reshape(K27, C_out).astype(jnp.bfloat16)
    bias2d = bias.reshape(1, C_out).astype(jnp.float32)

    # Large tiles (HBM-bound kernel); keep the grid length even for v7x's two
    # TensorCores; pad BN up with zero rows (sliced off at the end).
    tile, BN_pad = _choose_tiling(BN, tile_n)
    if BN_pad != BN:
        wg27 = jnp.pad(wg27, ((0, BN_pad - BN), (0, 0)))

    # VMEM budget: in/out blocks are lane-padded to 128 lanes and
    # double-buffered.  Raise the scoped limit explicitly (defaults are
    # 16/32 MiB on v5e / v6e+v7x) but stay well inside v7x's 64 MiB physical.
    vmem_need = 2 * tile * 128 * 2            # wg blocks (bf16)
    vmem_need += 2 * tile * 128 * 4           # out blocks (f32, 8->128 lanes)
    vmem_need += 2 * _round_up(K27, 8) * 128 * 2 + 2 * 8 * 128 * 4  # k + bias
    vmem_limit = int(min(56 * 2**20, max(32 * 2**20, 2 * vmem_need)))

    cost = pl.CostEstimate(
        flops=2 * BN_pad * K27 * C_out,
        transcendentals=0,
        bytes_accessed=BN_pad * (K27 * 2 + C_out * 4) + K27 * C_out * 2 + C_out * 4,
    )

    out = pl.pallas_call(
        _our_conv3d_kernel,
        out_shape=jax.ShapeDtypeStruct((BN_pad, C_out), jnp.float32),
        grid_spec=pltpu.PrefetchScalarGridSpec(
            num_scalar_prefetch=0,
            grid=(BN_pad // tile,),
            in_specs=[
                pl.BlockSpec((tile, K27), lambda n: (n, 0)),     # scaled slab
                pl.BlockSpec((K27, C_out), lambda n: (0, 0)),    # folded kernel (resident)
                pl.BlockSpec((1, C_out), lambda n: (0, 0)),      # bias (resident)
            ],
            out_specs=pl.BlockSpec((tile, C_out), lambda n: (n, 0)),
        ),
        compiler_params=pltpu.CompilerParams(
            dimension_semantics=("parallel",),
            vmem_limit_bytes=vmem_limit),
        cost_estimate=cost,
    )(wg27, k_flat, bias2d)

    # Row-major output: plain slice + reshape, no transpose pass.
    return out[:BN].reshape(B, N, C_out)


def our_conv3d_reference(inp, pos, kernel, bias, grid_min, dx):
    """Pure-JAX f32 replica of the PyTorch forward, for correctness checking."""
    B, C_in, X, Y, Z = inp.shape
    _, N, _ = pos.shape
    C_out = kernel.shape[-1]
    grid_vals = jnp.transpose(inp, (0, 2, 3, 4, 1))
    Xp = (pos - grid_min) / dx
    base = Xp.astype(jnp.int32)
    fx = Xp - base.astype(Xp.dtype) - 0.5
    w = jnp.stack([0.5 * (0.5 - fx) ** 2,
                   0.75 - fx ** 2,
                   0.5 * (0.5 + fx) ** 2], axis=-2)
    b_idx = jnp.arange(B)[:, None]
    result = jnp.zeros((B, N, C_out), jnp.float32)
    for (i, j, k) in itertools.product(range(3), repeat=3):
        weight = (w[..., i, 0] * w[..., j, 1] * w[..., k, 2])[..., None]
        ix = base[..., 0] + (i - 1)
        iy = base[..., 1] + (j - 1)
        iz = base[..., 2] + (k - 1)
        gathered = grid_vals[b_idx, ix, iy, iz]
        result = result + weight * (gathered @ kernel[i, j, k] + bias[None, None, :])
    return result


if __name__ == "__main__":
    key = jax.random.PRNGKey(0)
    k_inp, k_pos, k_ker, k_bias = jax.random.split(key, 4)

    B, C_in, C_out = 2, 4, 8
    X = Y = Z = 16
    N = 200          # BN=400 -> 2 grid steps + zero-row padding are exercised

    # Buffers (deterministic): unit grid starting at the origin.
    grid_min = jnp.zeros((3,), jnp.float32)
    dx = jnp.ones((3,), jnp.float32)

    # Inputs: positions strictly inside the grid so all 27 neighbors are valid.
    inp = jax.random.normal(k_inp, (B, C_in, X, Y, Z), dtype=jnp.float32)
    pos = jax.random.uniform(k_pos, (B, N, 3), dtype=jnp.float32,
                             minval=1.5, maxval=14.5)

    # Parameters (deterministic init; shapes from the module's __init__).
    kernel = jax.random.normal(k_ker, (3, 3, 3, C_in, C_out), dtype=jnp.float32) * 0.1
    bias = jax.random.normal(k_bias, (C_out,), dtype=jnp.float32) * 0.1

    out = our_conv3d(inp, pos, kernel, bias, grid_min, dx)
    out = jax.block_until_ready(out)

    ref = our_conv3d_reference(inp, pos, kernel, bias, grid_min, dx)
    assert out.shape == (B, N, C_out)
    # bf16 slab + bf16 kernel into the MXU (f32 accumulation) -> loosened
    # tolerance vs the f32 reference.
    assert jnp.allclose(out, ref, atol=2e-2, rtol=2e-2), "mismatch vs reference"

    print("KERNEL_OK")
</pallas_src>

<mosaic_0001>
module attributes {stable_mosaic.version = 11 : i64} {
  func.func @_our_conv3d_kernel(%arg0: i32, %arg1: memref<256x108xbf16, #tpu.memory_space<vmem>>, %arg2: memref<108x8xbf16, #tpu.memory_space<vmem>>, %arg3: memref<1x8xf32, #tpu.memory_space<vmem>>, %arg4: memref<256x8xf32, #tpu.memory_space<vmem>>) attributes {dimension_semantics = [#tpu.dimension_semantics<parallel>], iteration_bounds = array<i64: 2>, scalar_prefetch = 0 : i64, scratch_operands = 0 : i64, tpu.core_type = #tpu.core_type<tc>, window_params = [{transform_indices = @transform_0, window_bounds = array<i64: 256, 108>}, {pipeline_mode = #tpu.pipeline_mode<synchronous>, transform_indices = @transform_1, window_bounds = array<i64: 108, 8>}, {pipeline_mode = #tpu.pipeline_mode<synchronous>, transform_indices = @transform_2, window_bounds = array<i64: 1, 8>}, {transform_indices = @transform_3, window_bounds = array<i64: 256, 8>}]} {
    %c0 = arith.constant 0 : index
    %c0_0 = arith.constant 0 : index
    %0 = vector.load %arg1[%c0, %c0_0] : memref<256x108xbf16, #tpu.memory_space<vmem>>, vector<256x108xbf16>
    %c0_1 = arith.constant 0 : index
    %c0_2 = arith.constant 0 : index
    %1 = vector.load %arg2[%c0_1, %c0_2] : memref<108x8xbf16, #tpu.memory_space<vmem>>, vector<108x8xbf16>
    %cst = arith.constant dense<0.000000e+00> : vector<256x8xf32>
    %2 = tpu.matmul %0, %1, %cst {dimension_numbers = #tpu.dot_dimension_numbers<[1], [0], [0], [1], [0, 0, 1, 1], [], []>} : vector<256x108xbf16>, vector<108x8xbf16>, vector<256x8xf32> -> vector<256x8xf32>
    %c0_3 = arith.constant 0 : index
    %c0_4 = arith.constant 0 : index
    %3 = vector.load %arg3[%c0_3, %c0_4] : memref<1x8xf32, #tpu.memory_space<vmem>>, vector<1x8xf32>
    %4 = vector.broadcast %3 : vector<1x8xf32> to vector<256x8xf32>
    %5 = arith.addf %2, %4 : vector<256x8xf32>
    %c0_5 = arith.constant 0 : index
    %c0_6 = arith.constant 0 : index
    %6 = vector.load %arg4[%c0_5, %c0_6] : memref<256x8xf32, #tpu.memory_space<vmem>>, vector<256x8xf32>
    tpu.vector_store %arg4[%c0_5, %c0_6], %5 {strides = array<i32>} : memref<256x8xf32, #tpu.memory_space<vmem>>, vector<256x8xf32>,
    return
  }
  func.func @transform_0(%arg0: i32) -> (i32, i32) {
    %c0_i32 = arith.constant 0 : i32
    %c0_i32_0 = arith.constant 0 : i32
    return %arg0, %c0_i32 : i32, i32
  }
  func.func @transform_1(%arg0: i32) -> (i32, i32) {
    %c0_i32 = arith.constant 0 : i32
    %c0_i32_0 = arith.constant 0 : i32
    %c0_i32_1 = arith.constant 0 : i32
    return %c0_i32, %c0_i32_0 : i32, i32
  }
  func.func @transform_2(%arg0: i32) -> (i32, i32) {
    %c0_i32 = arith.constant 0 : i32
    %c0_i32_0 = arith.constant 0 : i32
    %c0_i32_1 = arith.constant 0 : i32
    return %c0_i32, %c0_i32_0 : i32, i32
  }
  func.func @transform_3(%arg0: i32) -> (i32, i32) {
    %c0_i32 = arith.constant 0 : i32
    %c0_i32_0 = arith.constant 0 : i32
    return %arg0, %c0_i32 : i32, i32
  }
}

</mosaic_0001>

<llo_original>
// kernel: tpu_custom_call.1
$region0: #{tpu_custom_call.1}
  #allocation0 [shape = 'u32[]', space=smem, size = 0x4, offset = 0x4, fixed_abs, tag = 'smem constant byte address 0x4 - core index']
  #allocation1 [shape = 'u32[144,128]{1,0:T(1,128)}', space=vmem, size = 0x12000, scoped, tag = 'internal scratch']
  %s0 = inlined_call_operand.vmem [shape: bf16[512,108], index: 0, kind: input, shape index: {}]
  %s1 = inlined_call_operand.vmem [shape: bf16[108,8], index: 1, kind: input, shape index: {}]
  %s2 = inlined_call_operand.vmem [shape: f32[1,8], index: 2, kind: input, shape index: {}]
  %s3 = inlined_call_operand.vmem [shape: f32[512,8], index: 3, kind: output, shape index: {}]
  %s4 = sld [smem:[#allocation0]]
  $region45: #{tpu_custom_call.1} parent=0
    _
  %s6 = ssub.s32 1, %s4
  %s7 = scalar_select 0, %s6, %s4
  loop: start=0, step=1, limit=4
  $region2: #{tpu_custom_call.1} parent=0 // loop_pre_header
    _
  $region3: #{tpu_custom_call.1} parent=0 // loop_header
    %s9 = sphi 0, %s13
    %p10 = scmp.ge.s32.totalorder %s9, 4
    %s19 = sphi 0, %s21
    %s22 = sphi 0, %s19
    %s23 = sphi 0, %s22
    %s39 = sphi 0, %s23
    %s43 = sphi 0, %s43
    %s45 = sphi 0, %s43
    %s46 = sphi 0, %s45
    %s60 = sphi 0, %s46
    %s64 = sphi 0, %s64
    %s66 = sphi 0, %s64
    %s67 = sphi 0, %s66
    %s81 = sphi 0, %s67
    %s87 = sphi 0, %s89
    %s90 = sphi 0, %s87
    %s91 = sphi 0, %s90
    %s107 = sphi 0, %s91
  $region4: #{tpu_custom_call.1} parent=0 // loop_header_branch
    %12 = sbr.rel (%p10) target = $region8
  $region5: #{tpu_custom_call.1} parent=0 // loop_body
    %s14 = ssub.s32 %s9, 1
    %s15 = ssub.s32 %s9, 2
    %s16 = sadd.s32 %s9, 1
    %s17 = ssub.s32 %s9, %s16
    %p18 = scmp.eq.s32.totalorder %s17, 0
    %s20 = sadd.s32 %s19, 1
    %s21 = scalar_select %p18, %s19, %s20
    %p24 = pneg %p18
    %p25 = scmp.eq.s32.totalorder %s9, 1
    %p26 = por %p24, %p25
    %p27 = scmp.ne.s32.totalorder %s19, %s22
    %p28 = scmp.eq.s32.totalorder %s9, 0
    %p29 = por %p27, %p28
    %p30 = scmp.ne.s32.totalorder %s19, %s22
    %p31 = scmp.eq.s32.totalorder %s14, 1
    %p32 = por %p30, %p31
    %p33 = scmp.ne.s32.totalorder %s22, %s23
    %p34 = scmp.eq.s32.totalorder %s14, 0
    %p35 = por %p33, %p34
    %p36 = scmp.ne.s32.totalorder %s22, %s23
    %p37 = scmp.eq.s32.totalorder %s15, 1
    %p38 = por %p36, %p37
    %p40 = scmp.ne.s32.totalorder %s23, %s39
    %p41 = scmp.eq.s32.totalorder %s15, 0
    %p42 = por %p40, %p41
    %s44 = sadd.s32 %s43, 1
    %p47 = scmp.eq.s32.totalorder %s9, 1
    %p48 = scmp.ne.s32.totalorder %s43, %s45
    %p49 = scmp.eq.s32.totalorder %s9, 0
    %p50 = por %p48, %p49
    %p51 = scmp.ne.s32.totalorder %s43, %s45
    %p52 = scmp.eq.s32.totalorder %s14, 1
    %p53 = por %p51, %p52
    %p54 = scmp.ne.s32.totalorder %s45, %s46
    %p55 = scmp.eq.s32.totalorder %s14, 0
    %p56 = por %p54, %p55
    %p57 = scmp.ne.s32.totalorder %s45, %s46
    %p58 = scmp.eq.s32.totalorder %s15, 1
    %p59 = por %p57, %p58
    %p61 = scmp.ne.s32.totalorder %s46, %s60
    %p62 = scmp.eq.s32.totalorder %s15, 0
    %p63 = por %p61, %p62
    %s65 = sadd.s32 %s64, 1
    %p68 = scmp.eq.s32.totalorder %s9, 1
    %p69 = scmp.ne.s32.totalorder %s64, %s66
    %p70 = scmp.eq.s32.totalorder %s9, 0
    %p71 = por %p69, %p70
    %p72 = scmp.ne.s32.totalorder %s64, %s66
    %p73 = scmp.eq.s32.totalorder %s14, 1
    %p74 = por %p72, %p73
    %p75 = scmp.ne.s32.totalorder %s66, %s67
    %p76 = scmp.eq.s32.totalorder %s14, 0
    %p77 = por %p75, %p76
    %p78 = scmp.ne.s32.totalorder %s66, %s67
    %p79 = scmp.eq.s32.totalorder %s15, 1
    %p80 = por %p78, %p79
    %p82 = scmp.ne.s32.totalorder %s67, %s81
    %p83 = scmp.eq.s32.totalorder %s15, 0
    %p84 = por %p82, %p83
    %s85 = ssub.s32 %s9, %s16
    %p86 = scmp.eq.s32.totalorder %s85, 0
    %s88 = sadd.s32 %s87, 1
    %s89 = scalar_select %p86, %s87, %s88
    %p92 = pneg %p86
    %p93 = scmp.eq.s32.totalorder %s9, 1
    %p94 = por %p92, %p93
    %p95 = scmp.ne.s32.totalorder %s87, %s90
    %p96 = scmp.eq.s32.totalorder %s9, 0
    %p97 = por %p95, %p96
    %p98 = scmp.ne.s32.totalorder %s87, %s90
    %p99 = scmp.eq.s32.totalorder %s14, 1
    %p100 = por %p98, %p99
    %p101 = scmp.ne.s32.totalorder %s90, %s91
    %p102 = scmp.eq.s32.totalorder %s14, 0
    %p103 = por %p101, %p102
    %p104 = scmp.ne.s32.totalorder %s90, %s91
    %p105 = scmp.eq.s32.totalorder %s15, 1
    %p106 = por %p104, %p105
    %p108 = scmp.ne.s32.totalorder %s91, %s107
    %p109 = scmp.eq.s32.totalorder %s15, 0
    %p110 = por %p108, %p109
    %p111 = scmp.le.s32.totalorder 1, %s9
    %p112 = scmp.lt.s32.totalorder %s9, 3
    %p113 = pnand %p111, %p112
    %p114 = pneg %p113
    // Predicated region
    $region9: #{tpu_custom_call.1} parent=5 // pred_check
      _
    $region10: #{tpu_custom_call.1} parent=5 // pred_check_branch
      %116 = sbr.rel (%p113) target = $region12
    $region11: #{tpu_custom_call.1} parent=5 // pred_region
      %s117 = ssub.s32 %s9, 1
      // Predicated region
      $region13: #{tpu_custom_call.1} parent=11 // pred_check
        %p118 = pneg %p56
      $region14: #{tpu_custom_call.1} parent=11 // pred_check_branch
        %120 = sbr.rel (%p118) target = $region16
      $region15: #{tpu_custom_call.1} parent=11 // pred_region
        _
      $region16: #{tpu_custom_call.1} parent=11 // pred_fallthru
        _
      // Predicated region
      $region17: #{tpu_custom_call.1} parent=11 // pred_check
        %p121 = pneg %p77
      $region18: #{tpu_custom_call.1} parent=11 // pred_check_branch
        %123 = sbr.rel (%p121) target = $region20
      $region19: #{tpu_custom_call.1} parent=11 // pred_region
        _
      $region20: #{tpu_custom_call.1} parent=11 // pred_fallthru
        _
    $region12: #{tpu_custom_call.1} parent=5 // pred_fallthru
      _
    %p124 = scmp.lt.s32.totalorder %s9, 2
    // Predicated region
    $region21: #{tpu_custom_call.1} parent=5 // pred_check
      %p125 = pneg %p124
    $region22: #{tpu_custom_call.1} parent=5 // pred_check_branch
      %127 = sbr.rel (%p125) target = $region24
    $region23: #{tpu_custom_call.1} parent=5 // pred_region
      // Predicated region
      $region25: #{tpu_custom_call.1} parent=23 // pred_check
        %p128 = pneg %p29
      $region26: #{tpu_custom_call.1} parent=23 // pred_check_branch
        %130 = sbr.rel (%p128) target = $region28
      $region27: #{tpu_custom_call.1} parent=23 // pred_region
        %s131 = smul.u32 32, %s9
        %p132 = scmp.lt.s32.totalorder %s131, 63
        %s133 = scalar_select %p132, %s131, 63
        %s134 = smul.addr %s133, 4
        %s135 = scalar_lea.vmem %s0, %s134
        %s136 = smul.u32 32, %s9
      $region28: #{tpu_custom_call.1} parent=23 // pred_fallthru
        _
    $region24: #{tpu_custom_call.1} parent=5 // pred_fallthru
      _
    %p137 = scmp.le.s32.totalorder 1, %s9
    %p138 = scmp.lt.s32.totalorder %s9, 3
    %p139 = pnand %p137, %p138
    %p140 = pneg %p139
    // Predicated region
    $region29: #{tpu_custom_call.1} parent=5 // pred_check
      _
    $region30: #{tpu_custom_call.1} parent=5 // pred_check_branch
      %142 = sbr.rel (%p139) target = $region32
    $region31: #{tpu_custom_call.1} parent=5 // pred_region
      %s143 = ssub.s32 %s9, 1
      %s144 = smul.u32 32, %s14
      %p145 = scmp.lt.s32.totalorder %s144, 63
      %s146 = scalar_select %p145, %s144, 63
      %s147 = smul.addr %s146, 4
      %s148 = scalar_lea.vmem %s0, %s147
      %p149 = pneg %p35
      %p150 = pneg %p32
      %p151 = pneg %p56
      %p152 = pneg %p53
      %p153 = pneg %p77
      %p154 = pneg %p74
      %p155 = pneg %p103
      %p156 = pneg %p100
      %s157 = smul.u32 32, %s14
      %p158 = scmp.lt.s32.totalorder %s157, 63
      %s159 = scalar_select %p158, %s157, 63
      %s160 = smul.addr %s159, 8
      %s161 = scalar_lea.vmem %s3, %s160
      %s162 = smul.u32 32, %s14
      %p163 = scmp.lt.s32.totalorder %s162, 63
      %s164 = scalar_select %p163, %s162, 63
      %s165 = smul.addr %s164, 4
      %s166 = scalar_lea.vmem %s0, %s165
      %s167 = smul.u32 32, %s14
      %s168 = smul.u32 32, %s14
      %p169 = scmp.lt.s32.totalorder %s168, 63
      %s170 = scalar_select %p169, %s168, 63
      %s171 = smul.addr %s170, 8
      %s172 = scalar_lea.vmem %s3, %s171
      %s173 = smul.u32 32, %s14
      %v175 = vld [vmem:[%s166] sm:$0xf]
      %v176 = vld [vmem:[%s166 + $0x4] sm:$0xf]
      %v177 = vld [vmem:[%s166 + $0x8] sm:$0xf]
      %v178 = vld [vmem:[%s166 + $0xc] sm:$0xf]
      %v179 = vld [vmem:[%s166 + $0x10] sm:$0xf]
      %v180 = vld [vmem:[%s166 + $0x14] sm:$0xf]
      %v181 = vld [vmem:[%s166 + $0x18] sm:$0xf]
      %v182 = vld [vmem:[%s166 + $0x1c] sm:$0xf]
      %v183 = vld [vmem:[%s166 + $0x20] sm:$0xf]
      %v184 = vld [vmem:[%s166 + $0x24] sm:$0xf]
      %v185 = vld [vmem:[%s166 + $0x28] sm:$0xf]
      %v186 = vld [vmem:[%s166 + $0x2c] sm:$0xf]
      %v187 = vld [vmem:[%s166 + $0x30] sm:$0xf]
      %v188 = vld [vmem:[%s166 + $0x34] sm:$0xf]
      %v189 = vld [vmem:[%s166 + $0x38] sm:$0xf]
      %v190 = vld [vmem:[%s166 + $0x3c] sm:$0xf]
      %v191 = vld [vmem:[%s166 + $0x40] sm:$0xf]
      %v192 = vld [vmem:[%s166 + $0x44] sm:$0xf]
      %v193 = vld [vmem:[%s166 + $0x48] sm:$0xf]
      %v194 = vld [vmem:[%s166 + $0x4c] sm:$0xf]
      %v195 = vld [vmem:[%s166 + $0x50] sm:$0xf]
      %v196 = vld [vmem:[%s166 + $0x54] sm:$0xf]
      %v197 = vld [vmem:[%s166 + $0x58] sm:$0xf]
      %v198 = vld [vmem:[%s166 + $0x5c] sm:$0xf]
      %v199 = vld [vmem:[%s166 + $0x60] sm:$0xf]
      %v200 = vld [vmem:[%s166 + $0x64] sm:$0xf]
      %v201 = vld [vmem:[%s166 + $0x68] sm:$0xf]
      %v202 = vld [vmem:[%s166 + $0x6c] sm:$0xf]
      %v203 = vld [vmem:[%s166 + $0x70] sm:$0xf]
      %v204 = vld [vmem:[%s166 + $0x74] sm:$0xf]
      %v205 = vld [vmem:[%s166 + $0x78] sm:$0xf]
      %v206 = vld [vmem:[%s166 + $0x7c] sm:$0xf]
      %v207 = vld [vmem:[%s1] sm:$0xf]
      %v208 = vld [vmem:[%s1 + $0x4] sm:$0xf]
      %v209 = vld [vmem:[%s1 + $0x8] sm:$0xf]
      %v210 = vld [vmem:[%s1 + $0xc] sm:$0xf]
      %v211 = vld [vmem:[%s1 + $0x10] sm:$0xf]
      %v212 = vld [vmem:[%s1 + $0x14] sm:$0xf]
      %v213 = vld [vmem:[%s1 + $0x18] sm:$0xf]
      %v214 = vld [vmem:[%s1 + $0x1c] sm:$0xf]
      %v215 = vld [vmem:[%s1 + $0x20] sm:$0xf]
      %v216 = vld [vmem:[%s1 + $0x24] sm:$0xf]
      %v217 = vld [vmem:[%s1 + $0x28] sm:$0xf]
      %v218 = vld [vmem:[%s1 + $0x2c] sm:$0xf]
      %v219 = vld [vmem:[%s1 + $0x30] sm:$0xf]
      %v220 = vld [vmem:[%s1 + $0x34] sm:$0x3]
      %v221 = vld [vmem:[%s2] sm:$0x1]
      %v223 = vlaneseq
      %v224 = vshrl.u32 %v223, 7
      %v225 = vsub.s32 0, %v224
      %v226 = vrot.slane %v221, %v225
      %v260 = vunpack.c.l.b16 %v175
      %v261 = vunpack.c.l.b16 %v176
      %v262 = vunpack.c.l.b16 %v177
      %v263 = vunpack.c.l.b16 %v178
      %v264 = vunpack.c.l.b16 %v179
      %v265 = vunpack.c.l.b16 %v180
      %v266 = vunpack.c.l.b16 %v181
      %v267 = vunpack.c.l.b16 %v182
      %v268 = vunpack.c.l.b16 %v183
      %v269 = vunpack.c.l.b16 %v184
      %v270 = vunpack.c.l.b16 %v185
      %v271 = vunpack.c.l.b16 %v186
      %v272 = vunpack.c.l.b16 %v187
      %v273 = vunpack.c.l.b16 %v188
      %v274 = vunpack.c.l.b16 %v189
      %v275 = vunpack.c.l.b16 %v190
      %v276 = vunpack.c.l.b16 %v191
      %v277 = vunpack.c.l.b16 %v192
      %v278 = vunpack.c.l.b16 %v193
      %v279 = vunpack.c.l.b16 %v194
      %v280 = vunpack.c.l.b16 %v195
      %v281 = vunpack.c.l.b16 %v196
      %v282 = vunpack.c.l.b16 %v197
      %v283 = vunpack.c.l.b16 %v198
      %v284 = vunpack.c.l.b16 %v199
      %v285 = vunpack.c.l.b16 %v200
      %v286 = vunpack.c.l.b16 %v201
      %v287 = vunpack.c.l.b16 %v202
      %v288 = vunpack.c.l.b16 %v203
      %v289 = vunpack.c.l.b16 %v204
      %v290 = vunpack.c.l.b16 %v205
      %v291 = vunpack.c.l.b16 %v206
      %v292 = vpack.c.b16 %v261, %v260
      %v293 = vpack.c.b16 %v263, %v262
      %v294 = vpack.c.b16 %v265, %v264
      %v295 = vpack.c.b16 %v267, %v266
      %v296 = vpack.c.b16 %v269, %v268
      %v297 = vpack.c.b16 %v271, %v270
      %v298 = vpack.c.b16 %v273, %v272
      %v299 = vpack.c.b16 %v275, %v274
      %v300 = vpack.c.b16 %v277, %v276
      %v301 = vpack.c.b16 %v279, %v278
      %v302 = vpack.c.b16 %v281, %v280
      %v303 = vpack.c.b16 %v283, %v282
      %v304 = vpack.c.b16 %v285, %v284
      %v305 = vpack.c.b16 %v287, %v286
      %v306 = vpack.c.b16 %v289, %v288
      %v307 = vpack.c.b16 %v291, %v290
      %v322 = vunpack.c.l.b16 %v207
      %v323 = vunpack.c.l.b16 %v208
      %v324 = vunpack.c.l.b16 %v209
      %v325 = vunpack.c.l.b16 %v210
      %v326 = vunpack.c.l.b16 %v211
      %v327 = vunpack.c.l.b16 %v212
      %v328 = vunpack.c.l.b16 %v213
      %v329 = vunpack.c.l.b16 %v214
      %v330 = vunpack.c.l.b16 %v215
      %v331 = vunpack.c.l.b16 %v216
      %v332 = vunpack.c.l.b16 %v217
      %v333 = vunpack.c.l.b16 %v218
      %v334 = vunpack.c.l.b16 %v219
      %v335 = vunpack.c.l.b16 %v220
      %v336 = vpack.c.b16 %v323, %v322
      %v337 = vpack.c.b16 %v325, %v324
      %v338 = vpack.c.b16 %v327, %v326
      %v339 = vpack.c.b16 %v329, %v328
      %v340 = vpack.c.b16 %v331, %v330
      %v341 = vpack.c.b16 %v333, %v332
      %v342 = vpack.c.b16 %v335, %v334
      %vm349 = vcmask 883712
      %v351 = vsel %vm349, %v292, 0
      %v354 = vsel %vm349, %v293, 0
      %v357 = vsel %vm349, %v294, 0
      %v360 = vsel %vm349, %v295, 0
      %v363 = vsel %vm349, %v296, 0
      %v366 = vsel %vm349, %v297, 0
      %v369 = vsel %vm349, %v298, 0
      %v372 = vsel %vm349, %v299, 0
      %v375 = vsel %vm349, %v300, 0
      %v378 = vsel %vm349, %v301, 0
      %v381 = vsel %vm349, %v302, 0
      %v384 = vsel %vm349, %v303, 0
      %v387 = vsel %vm349, %v304, 0
      %v390 = vsel %vm349, %v305, 0
      %v393 = vsel %vm349, %v306, 0
      %v396 = vsel %vm349, %v307, 0
      %vm398 = vcmask 1045504
      %v400 = vsel %vm398, %v342, 0
      %402 = vmatprep.subr.bf16.mxu0 0
      %403 = vmatpush1.bf16.msra.mxu0 %v336
      %404 = vmatprep.subr.bf16.mxu0 0
      %405 = vmatpush1.bf16.msra.mxu0 %v337
      %406 = vmatprep.subr.bf16.mxu0 0
      %407 = vmatpush1.bf16.msra.mxu0 %v338
      %408 = vmatprep.subr.bf16.mxu0 0
      %409 = vmatpush1.bf16.msra.mxu0 %v339
      %410 = vmatprep.subr.bf16.mxu0 0
      %411 = vmatpush1.bf16.msra.mxu0 %v340
      %412 = vmatprep.subr.bf16.mxu0 0
      %413 = vmatpush1.bf16.msra.mxu0 %v341
      %414 = vmatprep.subr.bf16.mxu0 0
      %415 = vmatpush1.bf16.msra.mxu0 %v400
      %416 = vmatprep.subr.bf16.mxu0 0
      %417 = vmatpush1.bf16.msra.mxu0 0
      %418 = vmatprep.subr.bf16.mxu0 0
      %419 = vmatpush1.bf16.msra.mxu0 0
      %420 = vmatprep.subr.bf16.mxu0 0
      %421 = vmatpush1.bf16.msra.mxu0 0
      %422 = vmatprep.subr.bf16.mxu0 0
      %423 = vmatpush1.bf16.msra.mxu0 0
      %424 = vmatprep.subr.bf16.mxu0 0
      %425 = vmatpush1.bf16.msra.mxu0 0
      %426 = vmatprep.subr.bf16.mxu0 0
      %427 = vmatpush1.bf16.msra.mxu0 0
      %428 = vmatprep.subr.bf16.mxu0 0
      %429 = vmatpush1.bf16.msra.mxu0 0
      %430 = vmatprep.subr.bf16.mxu0 0
      %431 = vmatpush1.bf16.msra.mxu0 0
      %432 = vmatprep.subr.bf16.mxu0 0
      %433 = vmatpush1.bf16.msra.mxu0 0
      %434 = vmatprep.mubr.bf16.mxu0 0
      %435 = vmatmul.mubr.bf16.gmra.mrb[0].mxu0 %v351
      %v436 = vpop.f32.mrb[0].mxu0
      %v437 = vadd.f32 %v226, %v436
      %v438 = vpop.f32.mrb[0].mxu0
      %v439 = vpop.f32.mrb[0].mxu0
      %v440 = vadd.f32 %v226, %v439
      %v441 = vpop.f32.mrb[0].mxu0
      %442 = vmatprep.mubr.bf16.mxu0 0
      %443 = vmatmul.mubr.bf16.gmra.mrb[0].mxu0 %v354
      %v444 = vpop.f32.mrb[0].mxu0
      %v445 = vadd.f32 %v226, %v444
      %v446 = vpop.f32.mrb[0].mxu0
      %v447 = vpop.f32.mrb[0].mxu0
      %v448 = vadd.f32 %v226, %v447
      %v449 = vpop.f32.mrb[0].mxu0
      %450 = vmatprep.mubr.bf16.mxu0 0
      %451 = vmatmul.mubr.bf16.gmra.mrb[0].mxu0 %v357
      %v452 = vpop.f32.mrb[0].mxu0
      %v453 = vadd.f32 %v226, %v452
      %v454 = vpop.f32.mrb[0].mxu0
      %v455 = vpop.f32.mrb[0].mxu0
      %v456 = vadd.f32 %v226, %v455
      %v457 = vpop.f32.mrb[0].mxu0
      %458 = vmatprep.mubr.bf16.mxu0 0
      %459 = vmatmul.mubr.bf16.gmra.mrb[0].mxu0 %v360
      %v460 = vpop.f32.mrb[0].mxu0
      %v461 = vadd.f32 %v226, %v460
      %v462 = vpop.f32.mrb[0].mxu0
      %v463 = vpop.f32.mrb[0].mxu0
      %v464 = vadd.f32 %v226, %v463
      %v465 = vpop.f32.mrb[0].mxu0
      %466 = vmatprep.mubr.bf16.mxu0 0
      %467 = vmatmul.mubr.bf16.gmra.mrb[0].mxu0 %v363
      %v468 = vpop.f32.mrb[0].mxu0
      %v469 = vadd.f32 %v226, %v468
      %v470 = vpop.f32.mrb[0].mxu0
      %v471 = vpop.f32.mrb[0].mxu0
      %v472 = vadd.f32 %v226, %v471
      %v473 = vpop.f32.mrb[0].mxu0
      %474 = vmatprep.mubr.bf16.mxu0 0
      %475 = vmatmul.mubr.bf16.gmra.mrb[0].mxu0 %v366
      %v476 = vpop.f32.mrb[0].mxu0
      %v477 = vadd.f32 %v226, %v476
      %v478 = vpop.f32.mrb[0].mxu0
      %v479 = vpop.f32.mrb[0].mxu0
      %v480 = vadd.f32 %v226, %v479
      %v481 = vpop.f32.mrb[0].mxu0
      %482 = vmatprep.mubr.bf16.mxu0 0
      %483 = vmatmul.mubr.bf16.gmra.mrb[0].mxu0 %v369
      %v484 = vpop.f32.mrb[0].mxu0
      %v485 = vadd.f32 %v226, %v484
      %v486 = vpop.f32.mrb[0].mxu0
      %v487 = vpop.f32.mrb[0].mxu0
      %v488 = vadd.f32 %v226, %v487
      %v489 = vpop.f32.mrb[0].mxu0
      %490 = vmatprep.mubr.bf16.mxu0 0
      %491 = vmatmul.mubr.bf16.gmra.mrb[0].mxu0 %v372
      %v492 = vpop.f32.mrb[0].mxu0
      %v493 = vadd.f32 %v226, %v492
      %v494 = vpop.f32.mrb[0].mxu0
      %v495 = vpop.f32.mrb[0].mxu0
      %v496 = vadd.f32 %v226, %v495
      %v497 = vpop.f32.mrb[0].mxu0
      %498 = vmatprep.mubr.bf16.mxu0 0
      %499 = vmatmul.mubr.bf16.gmra.mrb[0].mxu0 %v375
      %v500 = vpop.f32.mrb[0].mxu0
      %v501 = vadd.f32 %v226, %v500
      %v502 = vpop.f32.mrb[0].mxu0
      %v503 = vpop.f32.mrb[0].mxu0
      %v504 = vadd.f32 %v226, %v503
      %v505 = vpop.f32.mrb[0].mxu0
      %506 = vmatprep.mubr.bf16.mxu0 0
      %507 = vmatmul.mubr.bf16.gmra.mrb[0].mxu0 %v378
      %v508 = vpop.f32.mrb[0].mxu0
      %v509 = vadd.f32 %v226, %v508
      %v510 = vpop.f32.mrb[0].mxu0
      %v511 = vpop.f32.mrb[0].mxu0
      %v512 = vadd.f32 %v226, %v511
      %v513 = vpop.f32.mrb[0].mxu0
      %514 = vmatprep.mubr.bf16.mxu0 0
      %515 = vmatmul.mubr.bf16.gmra.mrb[0].mxu0 %v381
      %v516 = vpop.f32.mrb[0].mxu0
      %v517 = vadd.f32 %v226, %v516
      %v518 = vpop.f32.mrb[0].mxu0
      %v519 = vpop.f32.mrb[0].mxu0
      %v520 = vadd.f32 %v226, %v519
      %v521 = vpop.f32.mrb[0].mxu0
      %522 = vmatprep.mubr.bf16.mxu0 0
      %523 = vmatmul.mubr.bf16.gmra.mrb[0].mxu0 %v384
      %v524 = vpop.f32.mrb[0].mxu0
      %v525 = vadd.f32 %v226, %v524
      %v526 = vpop.f32.mrb[0].mxu0
      %v527 = vpop.f32.mrb[0].mxu0
      %v528 = vadd.f32 %v226, %v527
      %v529 = vpop.f32.mrb[0].mxu0
      %530 = vmatprep.mubr.bf16.mxu0 0
      %531 = vmatmul.mubr.bf16.gmra.mrb[0].mxu0 %v387
      %v532 = vpop.f32.mrb[0].mxu0
      %v533 = vadd.f32 %v226, %v532
      %v534 = vpop.f32.mrb[0].mxu0
      %v535 = vpop.f32.mrb[0].mxu0
      %v536 = vadd.f32 %v226, %v535
      %v537 = vpop.f32.mrb[0].mxu0
      %538 = vmatprep.mubr.bf16.mxu0 0
      %539 = vmatmul.mubr.bf16.gmra.mrb[0].mxu0 %v390
      %v540 = vpop.f32.mrb[0].mxu0
      %v541 = vadd.f32 %v226, %v540
      %v542 = vpop.f32.mrb[0].mxu0
      %v543 = vpop.f32.mrb[0].mxu0
      %v544 = vadd.f32 %v226, %v543
      %v545 = vpop.f32.mrb[0].mxu0
      %546 = vmatprep.mubr.bf16.mxu0 0
      %547 = vmatmul.mubr.bf16.gmra.mrb[0].mxu0 %v393
      %v548 = vpop.f32.mrb[0].mxu0
      %v549 = vadd.f32 %v226, %v548
      %v550 = vpop.f32.mrb[0].mxu0
      %v551 = vpop.f32.mrb[0].mxu0
      %v552 = vadd.f32 %v226, %v551
      %v553 = vpop.f32.mrb[0].mxu0
      %554 = vmatprep.mubr.bf16.mxu0 0
      %555 = vmatmul.mubr.bf16.gmra.mrb[0].mxu0 %v396
      %v556 = vpop.f32.mrb[0].mxu0
      %v557 = vadd.f32 %v226, %v556
      %v558 = vpop.f32.mrb[0].mxu0
      %v559 = vpop.f32.mrb[0].mxu0
      %v560 = vadd.f32 %v226, %v559
      %v561 = vpop.f32.mrb[0].mxu0
      %562 = vdwg.mxu0
      %vm563 = vcmask 64512
      %564 = vst.msk [vmem:[%s172] sm:$0xff] %vm563, %v437
      %565 = vst.msk [vmem:[%s172 + $0x8] sm:$0xff] %vm563, %v440
      %566 = vst.msk [vmem:[%s172 + $0x10] sm:$0xff] %vm563, %v445
      %567 = vst.msk [vmem:[%s172 + $0x18] sm:$0xff] %vm563, %v448
      %568 = vst.msk [vmem:[%s172 + $0x20] sm:$0xff] %vm563, %v453
      %569 = vst.msk [vmem:[%s172 + $0x28] sm:$0xff] %vm563, %v456
      %570 = vst.msk [vmem:[%s172 + $0x30] sm:$0xff] %vm563, %v461
      %571 = vst.msk [vmem:[%s172 + $0x38] sm:$0xff] %vm563, %v464
      %572 = vst.msk [vmem:[%s172 + $0x40] sm:$0xff] %vm563, %v469
      %573 = vst.msk [vmem:[%s172 + $0x48] sm:$0xff] %vm563, %v472
      %574 = vst.msk [vmem:[%s172 + $0x50] sm:$0xff] %vm563, %v477
      %575 = vst.msk [vmem:[%s172 + $0x58] sm:$0xff] %vm563, %v480
      %576 = vst.msk [vmem:[%s172 + $0x60] sm:$0xff] %vm563, %v485
      %577 = vst.msk [vmem:[%s172 + $0x68] sm:$0xff] %vm563, %v488
      %578 = vst.msk [vmem:[%s172 + $0x70] sm:$0xff] %vm563, %v493
      %579 = vst.msk [vmem:[%s172 + $0x78] sm:$0xff] %vm563, %v496
      %580 = vst.msk [vmem:[%s172 + $0x80] sm:$0xff] %vm563, %v501
      %581 = vst.msk [vmem:[%s172 + $0x88] sm:$0xff] %vm563, %v504
      %582 = vst.msk [vmem:[%s172 + $0x90] sm:$0xff] %vm563, %v509
      %583 = vst.msk [vmem:[%s172 + $0x98] sm:$0xff] %vm563, %v512
      %584 = vst.msk [vmem:[%s172 + $0xa0] sm:$0xff] %vm563, %v517
      %585 = vst.msk [vmem:[%s172 + $0xa8] sm:$0xff] %vm563, %v520
      %586 = vst.msk [vmem:[%s172 + $0xb0] sm:$0xff] %vm563, %v525
      %587 = vst.msk [vmem:[%s172 + $0xb8] sm:$0xff] %vm563, %v528
      %588 = vst.msk [vmem:[%s172 + $0xc0] sm:$0xff] %vm563, %v533
      %589 = vst.msk [vmem:[%s172 + $0xc8] sm:$0xff] %vm563, %v536
      %590 = vst.msk [vmem:[%s172 + $0xd0] sm:$0xff] %vm563, %v541
      %591 = vst.msk [vmem:[%s172 + $0xd8] sm:$0xff] %vm563, %v544
      %592 = vst.msk [vmem:[%s172 + $0xe0] sm:$0xff] %vm563, %v549
      %593 = vst.msk [vmem:[%s172 + $0xe8] sm:$0xff] %vm563, %v552
      %594 = vst.msk [vmem:[%s172 + $0xf0] sm:$0xff] %vm563, %v557
      %595 = vst.msk [vmem:[%s172 + $0xf8] sm:$0xff] %vm563, %v560
      %s596 = smul.u32 32, %s14
      %p597 = scmp.lt.s32.totalorder %s596, 63
      %s598 = scalar_select %p597, %s596, 63
      %s599 = smul.addr %s598, 8
      %s600 = scalar_lea.vmem %s3, %s599
      // Predicated region
      $region33: #{tpu_custom_call.1} parent=31 // pred_check
        %p601 = pneg %p100
      $region34: #{tpu_custom_call.1} parent=31 // pred_check_branch
        %603 = sbr.rel (%p601) target = $region36
      $region35: #{tpu_custom_call.1} parent=31 // pred_region
        %s604 = smul.u32 32, %s14
      $region36: #{tpu_custom_call.1} parent=31 // pred_fallthru
        _
    $region32: #{tpu_custom_call.1} parent=5 // pred_fallthru
      _
    %p605 = scmp.le.s32.totalorder 2, %s9
    // Predicated region
    $region37: #{tpu_custom_call.1} parent=5 // pred_check
      %p606 = pneg %p605
    $region38: #{tpu_custom_call.1} parent=5 // pred_check_branch
      %608 = sbr.rel (%p606) target = $region40
    $region39: #{tpu_custom_call.1} parent=5 // pred_region
      %s609 = ssub.s32 %s9, 2
      // Predicated region
      $region41: #{tpu_custom_call.1} parent=39 // pred_check
        %p610 = pneg %p106
      $region42: #{tpu_custom_call.1} parent=39 // pred_check_branch
        %612 = sbr.rel (%p610) target = $region44
      $region43: #{tpu_custom_call.1} parent=39 // pred_region
        %s613 = smul.u32 32, %s15
        %p614 = scmp.lt.s32.totalorder %s613, 63
        %s615 = scalar_select %p614, %s613, 63
        %s616 = smul.addr %s615, 8
        %s617 = scalar_lea.vmem %s3, %s616
      $region44: #{tpu_custom_call.1} parent=39 // pred_fallthru
        _
    $region40: #{tpu_custom_call.1} parent=5 // pred_fallthru
      _
  $region6: #{tpu_custom_call.1} parent=0 // loop_footer
    %s13 = sadd.s32 1, %s9
  $region7: #{tpu_custom_call.1} parent=0 // loop_footer_branch
    %8 = sbr.rel target = $region3
  $region8: #{tpu_custom_call.1} parent=0 // loop_exit
    _

</llo_original>
